<compile_context>
chip_gen: v7x
topology: tpu7x:2x2x1
jax: 0.10.0
libtpu: 0.0.40
codegen_flags: <defaults>
</compile_context>

<pallas_src>
import jax
import jax.numpy as jnp
from jax import lax
from jax.experimental import pallas as pl
from jax.experimental.pallas import tpu as pltpu

EMBED_DIM = 64
LEAKY_SLOPE = 0.01  # F.leaky_relu default negative_slope


# ----------------------------------------------------------------------------
# Kernel: two leaky-relu linear layers + 1-output head, weights resident.
# ----------------------------------------------------------------------------
def critic_kernel(w0_ref, w1_ref, wl_ref, x_ref, out_ref):
    # w0_ref : (Dp, Dp)  layer-0 weight (F.linear convention: (out, in))
    # w1_ref : (Dp, Dp)  layer-1 weight
    # wl_ref : (1, Dp)   final-layer weight
    # x_ref  : (tb, Dp)  activation tile (batch rows on sublanes, features on lanes)
    # out_ref: (1, tb)   lane-dense output tile
    nt = (((1,), (1,)), ((), ()))  # contract the feature ("in") axis of both operands

    x = x_ref[...]
    h = lax.dot_general(x, w0_ref[...], nt, preferred_element_type=jnp.float32)
    h = jnp.where(h >= 0, h, LEAKY_SLOPE * h)
    h = lax.dot_general(h, w1_ref[...], nt, preferred_element_type=jnp.float32)
    h = jnp.where(h >= 0, h, LEAKY_SLOPE * h)
    # Final layer has a single output: (1, Dp) x (tb, Dp) -> (1, tb), lane-dense.
    out_ref[...] = lax.dot_general(wl_ref[...], h, nt,
                                   preferred_element_type=jnp.float32)


# ----------------------------------------------------------------------------
# Parameter construction (mirrors torch.fmod(torch.randn(...), 2))
# ----------------------------------------------------------------------------
def init_params(key, obs_dim):
    D = obs_dim + 11
    E = EMBED_DIM
    ks = jax.random.split(key, 7)
    fmod2 = lambda a: jnp.fmod(a, 2.0)
    return dict(
        w1=fmod2(jax.random.normal(ks[0], (E, D * E), jnp.float32)),
        w2=fmod2(jax.random.normal(ks[1], (E, 1), jnp.float32)),
        b1=fmod2(jax.random.normal(ks[2], (D * E,), jnp.float32)),
        b2=fmod2(jax.random.normal(ks[3], (1,), jnp.float32)),
        z0=fmod2(jax.random.normal(ks[4], (D, E), jnp.float32)),  # Embedding(obs_dim+11, .)
        z1=fmod2(jax.random.normal(ks[5], (D, E), jnp.float32)),  # Embedding(obs_dim+11, .)
        z2=fmod2(jax.random.normal(ks[6], (1, E), jnp.float32)),  # Embedding(1, 1)
    )


def _generate_weights(params):
    """Literal (PyTorch-order) hypernetwork, batched over all embedding rows."""
    D = params["z0"].shape[0]
    E = EMBED_DIM
    z_all = jnp.concatenate([params["z0"], params["z1"], params["z2"]], axis=0)  # (2D+1, E)
    h_in = z_all @ params["w1"] + params["b1"]                                   # (2D+1, D*E)
    h_in = h_in.reshape(-1, D, E)
    h_fin = h_in @ params["w2"] + params["b2"]                                   # (2D+1, D, 1)
    w_rows = h_fin.reshape(-1, D)                                                # (2D+1, D)
    return w_rows[:D], w_rows[D:2 * D], w_rows[2 * D:2 * D + 1]                  # (D,D),(D,D),(1,D)


# ----------------------------------------------------------------------------
# Wrapper
# ----------------------------------------------------------------------------
def critic_forward(params, x, *, tb=None):
    D = params["z0"].shape[0]
    B = x.shape[0]

    # --- hypernet hoisted out of the kernel (computed once, tiny) ---
    w0, w1e, w_last = _generate_weights(params)

    # --- sublane-align the feature axis (D = obs_dim + 11 is often not 8-aligned) ---
    Dp = ((D + 7) // 8) * 8
    if Dp != D:
        pf = Dp - D
        x = jnp.pad(x, ((0, 0), (0, pf)))
        w0 = jnp.pad(w0, ((0, pf), (0, pf)))      # zero out-rows -> padded h stays 0
        w1e = jnp.pad(w1e, ((0, pf), (0, pf)))
        w_last = jnp.pad(w_last, ((0, 0), (0, pf)))
    x = x.astype(jnp.float32)
    # TODO(synk): on v5e (lowest HBM BW) x could be streamed as bf16 if tolerance allows.

    # --- batch tile selection: biggest that fits a conservative VMEM budget ---
    lane_w = ((Dp + 127) // 128) * 128            # VMEM lane padding of the feature axis
    # per batch row resident in VMEM: double-buffered x row + ~2 live f32 intermediates
    bytes_per_row = 4 * lane_w * 4
    budget = 16 << 20                             # batch-proportional VMEM budget (all gens)
    tb_fit = max(512, min(8192, (budget // bytes_per_row) // 128 * 128))
    if tb is None:
        if B <= 1024:
            tb = B                                # single tile: minimal per-step overhead
        else:
            # keep >= 2 grid steps so the parallel batch axis shards across both
            # TensorCores on v7x; step overhead is well amortized at this size.
            tb = min(tb_fit, ((pl.cdiv(B, 2) + 127) // 128) * 128)
    grid = (pl.cdiv(B, tb),)

    flops = 4 * B * Dp * Dp + 2 * B * Dp
    bytes_accessed = 4 * (x.size + w0.size + w1e.size + w_last.size + B)
    cost = pl.CostEstimate(flops=int(flops), transcendentals=0,
                           bytes_accessed=int(bytes_accessed))

    out_row = pl.pallas_call(
        critic_kernel,
        out_shape=jax.ShapeDtypeStruct((1, B), jnp.float32),
        grid_spec=pltpu.PrefetchScalarGridSpec(
            num_scalar_prefetch=0,
            grid=grid,
            in_specs=[
                pl.BlockSpec((Dp, Dp), lambda i: (0, 0)),   # w0      (resident)
                pl.BlockSpec((Dp, Dp), lambda i: (0, 0)),   # w1e     (resident)
                pl.BlockSpec((1, Dp), lambda i: (0, 0)),    # w_last  (resident)
                pl.BlockSpec((tb, Dp), lambda i: (i, 0)),   # x       (batch-tiled)
            ],
            out_specs=pl.BlockSpec((1, tb), lambda i: (0, i)),  # lane-dense output
        ),
        compiler_params=pltpu.CompilerParams(
            dimension_semantics=("parallel",),
            vmem_limit_bytes=32 * 1024 * 1024,
        ),
        cost_estimate=cost,
    )(w0, w1e, w_last, x)

    return out_row.reshape(B, 1)


# ----------------------------------------------------------------------------
# Pure-JAX reference (literal replica of the PyTorch forward)
# ----------------------------------------------------------------------------
def critic_reference(params, x):
    D = params["z0"].shape[0]
    E = EMBED_DIM

    def hyper(z):
        h_in = z @ params["w1"] + params["b1"]
        h_in = h_in.reshape(D, E)
        h_fin = h_in @ params["w2"] + params["b2"]
        return h_fin.reshape(1, D)

    def embed(zs):
        return jnp.concatenate([hyper(zs[i]) for i in range(zs.shape[0])], axis=0)

    w0, w1e, w2e = embed(params["z0"]), embed(params["z1"]), embed(params["z2"])
    leaky = lambda a: jnp.where(a >= 0, a, LEAKY_SLOPE * a)
    h = leaky(x @ w0.T)
    h = leaky(h @ w1e.T)
    return h @ w2e.T


if __name__ == "__main__":
    key = jax.random.PRNGKey(0)

    # --- primary small config: obs_dim=5 -> D=16 (8-aligned), batch=8 ---
    k_params, k_x, k2_params, k2_x, k3_x = jax.random.split(key, 5)
    obs_dim, batch = 5, 8
    params = init_params(k_params, obs_dim)
    x = jax.random.normal(k_x, (batch, obs_dim + 11), jnp.float32)
    out = jax.block_until_ready(critic_forward(params, x))
    ref = critic_reference(params, x)
    assert out.shape == (batch, 1), out.shape
    assert jnp.allclose(out, ref, rtol=1e-3, atol=1e-2), (out, ref)

    # --- non-8-aligned D path: obs_dim=4 -> D=15 (padded to 16), batch=10 ---
    obs_dim2, batch2 = 4, 10
    params2 = init_params(k2_params, obs_dim2)
    x2 = jax.random.normal(k2_x, (batch2, obs_dim2 + 11), jnp.float32)
    out2 = jax.block_until_ready(critic_forward(params2, x2))
    ref2 = critic_reference(params2, x2)
    assert out2.shape == (batch2, 1), out2.shape
    assert jnp.allclose(out2, ref2, rtol=1e-3, atol=1e-2), (out2, ref2)

    # --- multi-tile path with a partial last tile: batch=300, tb=128 ---
    batch3 = 300
    x3 = jax.random.normal(k3_x, (batch3, obs_dim + 11), jnp.float32)
    out3 = jax.block_until_ready(critic_forward(params, x3, tb=128))
    ref3 = critic_reference(params, x3)
    assert out3.shape == (batch3, 1), out3.shape
    assert jnp.allclose(out3, ref3, rtol=1e-3, atol=1e-2), (out3, ref3)

    print("KERNEL_OK")
</pallas_src>

<mosaic_0001>
module attributes {stable_mosaic.version = 11 : i64} {
  func.func @critic_kernel(%arg0: i32, %arg1: memref<16x16xf32, #tpu.memory_space<vmem>>, %arg2: memref<16x16xf32, #tpu.memory_space<vmem>>, %arg3: memref<1x16xf32, #tpu.memory_space<vmem>>, %arg4: memref<8x16xf32, #tpu.memory_space<vmem>>, %arg5: memref<1x8xf32, #tpu.memory_space<vmem>>) attributes {dimension_semantics = [#tpu.dimension_semantics<parallel>], iteration_bounds = array<i64: 1>, scalar_prefetch = 0 : i64, scratch_operands = 0 : i64, tpu.core_type = #tpu.core_type<tc>, window_params = [{pipeline_mode = #tpu.pipeline_mode<synchronous>, transform_indices = @transform_0, window_bounds = array<i64: 16, 16>}, {pipeline_mode = #tpu.pipeline_mode<synchronous>, transform_indices = @transform_1, window_bounds = array<i64: 16, 16>}, {pipeline_mode = #tpu.pipeline_mode<synchronous>, transform_indices = @transform_2, window_bounds = array<i64: 1, 16>}, {transform_indices = @transform_3, window_bounds = array<i64: 8, 16>}, {transform_indices = @transform_4, window_bounds = array<i64: 1, 8>}]} {
    %c0 = arith.constant 0 : index
    %c0_0 = arith.constant 0 : index
    %0 = vector.load %arg4[%c0, %c0_0] : memref<8x16xf32, #tpu.memory_space<vmem>>, vector<8x16xf32>
    %c0_1 = arith.constant 0 : index
    %c0_2 = arith.constant 0 : index
    %1 = vector.load %arg1[%c0_1, %c0_2] : memref<16x16xf32, #tpu.memory_space<vmem>>, vector<16x16xf32>
    %cst = arith.constant dense<0.000000e+00> : vector<8x16xf32>
    %2 = tpu.matmul %0, %1, %cst {dimension_numbers = #tpu.dot_dimension_numbers<[1], [1], [0], [0], [0, 0, 1, 0], [], []>} : vector<8x16xf32>, vector<16x16xf32>, vector<8x16xf32> -> vector<8x16xf32>
    %cst_3 = arith.constant 0.000000e+00 : f32
    %3 = vector.broadcast %cst_3 : f32 to vector<8x16xf32>
    %4 = arith.cmpf oge, %2, %3 : vector<8x16xf32>
    %cst_4 = arith.constant 0.00999999977 : f32
    %5 = vector.broadcast %cst_4 : f32 to vector<8x16xf32>
    %6 = arith.mulf %5, %2 : vector<8x16xf32>
    %7 = arith.select %4, %2, %6 : vector<8x16xi1>, vector<8x16xf32>
    %c0_5 = arith.constant 0 : index
    %c0_6 = arith.constant 0 : index
    %8 = vector.load %arg2[%c0_5, %c0_6] : memref<16x16xf32, #tpu.memory_space<vmem>>, vector<16x16xf32>
    %cst_7 = arith.constant dense<0.000000e+00> : vector<8x16xf32>
    %9 = tpu.matmul %7, %8, %cst_7 {dimension_numbers = #tpu.dot_dimension_numbers<[1], [1], [0], [0], [0, 0, 1, 0], [], []>} : vector<8x16xf32>, vector<16x16xf32>, vector<8x16xf32> -> vector<8x16xf32>
    %cst_8 = arith.constant 0.000000e+00 : f32
    %10 = vector.broadcast %cst_8 : f32 to vector<8x16xf32>
    %11 = arith.cmpf oge, %9, %10 : vector<8x16xf32>
    %cst_9 = arith.constant 0.00999999977 : f32
    %12 = vector.broadcast %cst_9 : f32 to vector<8x16xf32>
    %13 = arith.mulf %12, %9 : vector<8x16xf32>
    %14 = arith.select %11, %9, %13 : vector<8x16xi1>, vector<8x16xf32>
    %c0_10 = arith.constant 0 : index
    %c0_11 = arith.constant 0 : index
    %15 = vector.load %arg3[%c0_10, %c0_11] : memref<1x16xf32, #tpu.memory_space<vmem>>, vector<1x16xf32>
    %cst_12 = arith.constant dense<0.000000e+00> : vector<1x8xf32>
    %16 = tpu.matmul %15, %14, %cst_12 {dimension_numbers = #tpu.dot_dimension_numbers<[1], [1], [0], [0], [0, 0, 1, 0], [], []>} : vector<1x16xf32>, vector<8x16xf32>, vector<1x8xf32> -> vector<1x8xf32>
    %c0_13 = arith.constant 0 : index
    %c0_14 = arith.constant 0 : index
    %17 = vector.load %arg5[%c0_13, %c0_14] : memref<1x8xf32, #tpu.memory_space<vmem>>, vector<1x8xf32>
    tpu.vector_store %arg5[%c0_13, %c0_14], %16 {strides = array<i32>} : memref<1x8xf32, #tpu.memory_space<vmem>>, vector<1x8xf32>,
    return
  }
  func.func @transform_0(%arg0: i32) -> (i32, i32) {
    %c0_i32 = arith.constant 0 : i32
    %c0_i32_0 = arith.constant 0 : i32
    %c0_i32_1 = arith.constant 0 : i32
    return %c0_i32, %c0_i32_0 : i32, i32
  }
  func.func @transform_1(%arg0: i32) -> (i32, i32) {
    %c0_i32 = arith.constant 0 : i32
    %c0_i32_0 = arith.constant 0 : i32
    %c0_i32_1 = arith.constant 0 : i32
    return %c0_i32, %c0_i32_0 : i32, i32
  }
  func.func @transform_2(%arg0: i32) -> (i32, i32) {
    %c0_i32 = arith.constant 0 : i32
    %c0_i32_0 = arith.constant 0 : i32
    %c0_i32_1 = arith.constant 0 : i32
    return %c0_i32, %c0_i32_0 : i32, i32
  }
  func.func @transform_3(%arg0: i32) -> (i32, i32) {
    %c0_i32 = arith.constant 0 : i32
    %c0_i32_0 = arith.constant 0 : i32
    return %arg0, %c0_i32 : i32, i32
  }
  func.func @transform_4(%arg0: i32) -> (i32, i32) {
    %c0_i32 = arith.constant 0 : i32
    %c0_i32_0 = arith.constant 0 : i32
    return %c0_i32, %arg0 : i32, i32
  }
}

</mosaic_0001>

<llo_original>
// kernel: tpu_custom_call.1
$region0: #{tpu_custom_call.1}
  #allocation0 [shape = 'u32[]', space=smem, size = 0x4, offset = 0x4, fixed_abs, tag = 'smem constant byte address 0x4 - core index']
  #allocation1 [shape = 'u32[144,128]{1,0:T(1,128)}', space=vmem, size = 0x12000, scoped, tag = 'internal scratch']
  %s0 = inlined_call_operand.hbm [shape: f32[16,16], index: 0, kind: input, shape index: {}]
  %s1 = inlined_call_operand.hbm [shape: f32[16,16], index: 1, kind: input, shape index: {}]
  %s2 = inlined_call_operand.vmem [shape: f32[1,16], index: 2, kind: input, shape index: {}]
  %s3 = inlined_call_operand.vmem [shape: f32[8,16], index: 3, kind: input, shape index: {}]
  %s4 = inlined_call_operand.hbm [shape: f32[1,8], index: 4, kind: output, shape index: {}]
  %s5 = sld [smem:[#allocation0]]
  $region34: #{tpu_custom_call.1} parent=0
    _
  %s7 = ssub.s32 1, %s5
  %s8 = scalar_select 0, %s7, %s5
  $region1: #{tpu_custom_call.1} parent=0
    #allocation2 [shape = 'u8[8192]{0}', space=vmem, size = 0x2000, scoped, tag = 'input window, operand 0, single buffered']
    #allocation3 [shape = 's32[1]{0}', space=sflag, size = 0x4, scoped, tag = 'scoped memory for tpu_custom_call.1']
    #allocation4 [shape = 's32[1]{0}', space=sflag, size = 0x4, scoped, tag = 'scoped memory for tpu_custom_call.1']
    #allocation5 [shape = 'u8[8192]{0}', space=vmem, size = 0x2000, scoped, tag = 'input window, operand 1, single buffered']
    #allocation6 [shape = 's32[1]{0}', space=sflag, size = 0x4, scoped, tag = 'scoped memory for tpu_custom_call.1']
    #allocation7 [shape = 'u8[512]{0}', space=vmem, size = 0x400, scoped, tag = 'output window, operand 0, single buffered']
    %9 = vsyncpa [#allocation3], 0
    %10 = vsyncpa [#allocation6], 0
    %11 = vsyncpa [#allocation4], 0
    // Predicated region
    $region2: #{tpu_custom_call.1} parent=1 // pred_check
      _
    $region3: #{tpu_custom_call.1} parent=1 // pred_check_branch
      %13 = sbr.rel (0) target = $region5
    $region4: #{tpu_custom_call.1} parent=1 // pred_region
      %s15 = ssub.s32 256, 256
      %16 = vsyncadd [#allocation3], %s15
      %s17 = sshll.u32 [#allocation2], 4
      %s18 = int_to_ptr.vmem [resolvable:$true] %s17
      %23 = dma.hbm_to_vmem [thread:$0]  %s0, 256, %s18, [#allocation3], 128, 128, 8
    $region5: #{tpu_custom_call.1} parent=1 // pred_fallthru
      _
    // Predicated region
    $region6: #{tpu_custom_call.1} parent=1 // pred_check
      _
    $region7: #{tpu_custom_call.1} parent=1 // pred_check_branch
      %25 = sbr.rel (0) target = $region9
    $region8: #{tpu_custom_call.1} parent=1 // pred_region
      %s27 = ssub.s32 256, 256
      %28 = vsyncadd [#allocation6], %s27
      %s29 = sshll.u32 [#allocation5], 4
      %s30 = int_to_ptr.vmem [resolvable:$true] %s29
      %35 = dma.hbm_to_vmem [thread:$0]  %s1, 256, %s30, [#allocation6], 128, 128, 8
    $region9: #{tpu_custom_call.1} parent=1 // pred_fallthru
      _
    // Predicated region
    $region10: #{tpu_custom_call.1} parent=1 // pred_check
      _
    $region11: #{tpu_custom_call.1} parent=1 // pred_check_branch
      %37 = sbr.rel (0) target = $region13
    $region12: #{tpu_custom_call.1} parent=1 // pred_region
      _
    $region13: #{tpu_custom_call.1} parent=1 // pred_fallthru
      _
    // Predicated region
    $region14: #{tpu_custom_call.1} parent=1 // pred_check
      _
    $region15: #{tpu_custom_call.1} parent=1 // pred_check_branch
      %39 = sbr.rel (0) target = $region17
    $region16: #{tpu_custom_call.1} parent=1 // pred_region
      _
    $region17: #{tpu_custom_call.1} parent=1 // pred_fallthru
      _
    // Predicated region
    $region18: #{tpu_custom_call.1} parent=1 // pred_check
      _
    $region19: #{tpu_custom_call.1} parent=1 // pred_check_branch
      %41 = sbr.rel (0) target = $region21
    $region20: #{tpu_custom_call.1} parent=1 // pred_region
      %42 = dma.done [#allocation3], 256
    $region21: #{tpu_custom_call.1} parent=1 // pred_fallthru
      _
    // Predicated region
    $region22: #{tpu_custom_call.1} parent=1 // pred_check
      _
    $region23: #{tpu_custom_call.1} parent=1 // pred_check_branch
      %44 = sbr.rel (0) target = $region25
    $region24: #{tpu_custom_call.1} parent=1 // pred_region
      %45 = dma.done [#allocation6], 256
    $region25: #{tpu_custom_call.1} parent=1 // pred_fallthru
      _
    %v46 = vld [vmem:[%s3] sm:$0xff]
    %v47 = vld [vmem:[#allocation2] sm:$0xff]
    %v48 = vld [vmem:[#allocation2 + $0x8] sm:$0xff]
    %vm49 = vcmask 130048
    %v51 = vsel %vm49, %v46, 0
    %v54 = vsel %vm49, %v47, 0
    %v57 = vsel %vm49, %v48, 0
    %59 = vmatprep.subr.mxu0 0.0
    %60 = vmatpush1.xpose.msra.mxu0 %v54
    %61 = vmatprep.subr.mxu0 0.0
    %62 = vmatpush1.xpose.msra.mxu0 %v57
    %63 = vmatprep.subr.mxu0 0.0
    %64 = vmatpush1.xpose.msra.mxu0 0.0
    %65 = vmatprep.subr.mxu0 0.0
    %66 = vmatpush1.xpose.msra.mxu0 0.0
    %67 = vmatprep.subr.mxu0 0.0
    %68 = vmatpush1.xpose.msra.mxu0 0.0
    %69 = vmatprep.subr.mxu0 0.0
    %70 = vmatpush1.xpose.msra.mxu0 0.0
    %71 = vmatprep.subr.mxu0 0.0
    %72 = vmatpush1.xpose.msra.mxu0 0.0
    %73 = vmatprep.subr.mxu0 0.0
    %74 = vmatpush1.xpose.msra.mxu0 0.0
    %75 = vmatprep.subr.mxu0 0.0
    %76 = vmatpush1.xpose.msra.mxu0 0.0
    %77 = vmatprep.subr.mxu0 0.0
    %78 = vmatpush1.xpose.msra.mxu0 0.0
    %79 = vmatprep.subr.mxu0 0.0
    %80 = vmatpush1.xpose.msra.mxu0 0.0
    %81 = vmatprep.subr.mxu0 0.0
    %82 = vmatpush1.xpose.msra.mxu0 0.0
    %83 = vmatprep.subr.mxu0 0.0
    %84 = vmatpush1.xpose.msra.mxu0 0.0
    %85 = vmatprep.subr.mxu0 0.0
    %86 = vmatpush1.xpose.msra.mxu0 0.0
    %87 = vmatprep.subr.mxu0 0.0
    %88 = vmatpush1.xpose.msra.mxu0 0.0
    %89 = vmatprep.subr.mxu0 0.0
    %90 = vmatpush1.xpose.msra.mxu0 0.0
    %91 = vmatprep.subr.mxu0 0.0
    %92 = vmatpush1.xpose.msra.mxu0 0.0
    %93 = vmatprep.subr.mxu0 0.0
    %94 = vmatpush1.xpose.msra.mxu0 0.0
    %95 = vmatprep.subr.mxu0 0.0
    %96 = vmatpush1.xpose.msra.mxu0 0.0
    %97 = vmatprep.subr.mxu0 0.0
    %98 = vmatpush1.xpose.msra.mxu0 0.0
    %99 = vmatprep.subr.mxu0 0.0
    %100 = vmatpush1.xpose.msra.mxu0 0.0
    %101 = vmatprep.subr.mxu0 0.0
    %102 = vmatpush1.xpose.msra.mxu0 0.0
    %103 = vmatprep.subr.mxu0 0.0
    %104 = vmatpush1.xpose.msra.mxu0 0.0
    %105 = vmatprep.subr.mxu0 0.0
    %106 = vmatpush1.xpose.msra.mxu0 0.0
    %107 = vmatprep.subr.mxu0 0.0
    %108 = vmatpush1.xpose.msra.mxu0 0.0
    %109 = vmatprep.subr.mxu0 0.0
    %110 = vmatpush1.xpose.msra.mxu0 0.0
    %111 = vmatprep.subr.mxu0 0.0
    %112 = vmatpush1.xpose.msra.mxu0 0.0
    %113 = vmatprep.subr.mxu0 0.0
    %114 = vmatpush1.xpose.msra.mxu0 0.0
    %115 = vmatprep.subr.mxu0 0.0
    %116 = vmatpush1.xpose.msra.mxu0 0.0
    %117 = vmatprep.subr.mxu0 0.0
    %118 = vmatpush1.xpose.msra.mxu0 0.0
    %119 = vmatprep.subr.mxu0 0.0
    %120 = vmatpush1.xpose.msra.mxu0 0.0
    %121 = vmatprep.subr.mxu0 0.0
    %122 = vmatpush1.xpose.msra.mxu0 0.0
    %123 = vmatprep.mubr.f32.mxu0 0.0
    %124 = vmatmul.mubr.f32.gmra.mrb[0].mxu0 %v51
    %v125 = vpop.f32.mrb[0].mxu0
    %v126 = vadd.f32 0.0, %v125
    %v127 = vpop.f32.mrb[0].mxu0
    %128 = vdwg.mxu0
    %vm129 = vcmp.ge.f32.partialorder %v126, 0.0
    %v130 = vmul.f32 %v126, 0.01
    %v131 = vsel %vm129, %v126, %v130
    %v132 = vld [vmem:[#allocation5] sm:$0xff]
    %v133 = vld [vmem:[#allocation5 + $0x8] sm:$0xff]
    %v135 = vsel %vm49, %v131, 0
    %v138 = vsel %vm49, %v132, 0
    %v141 = vsel %vm49, %v133, 0
    %143 = vmatprep.subr.mxu0 0.0
    %144 = vmatpush1.xpose.msra.mxu0 %v138
    %145 = vmatprep.subr.mxu0 0.0
    %146 = vmatpush1.xpose.msra.mxu0 %v141
    %147 = vmatprep.subr.mxu0 0.0
    %148 = vmatpush1.xpose.msra.mxu0 0.0
    %149 = vmatprep.subr.mxu0 0.0
    %150 = vmatpush1.xpose.msra.mxu0 0.0
    %151 = vmatprep.subr.mxu0 0.0
    %152 = vmatpush1.xpose.msra.mxu0 0.0
    %153 = vmatprep.subr.mxu0 0.0
    %154 = vmatpush1.xpose.msra.mxu0 0.0
    %155 = vmatprep.subr.mxu0 0.0
    %156 = vmatpush1.xpose.msra.mxu0 0.0
    %157 = vmatprep.subr.mxu0 0.0
    %158 = vmatpush1.xpose.msra.mxu0 0.0
    %159 = vmatprep.subr.mxu0 0.0
    %160 = vmatpush1.xpose.msra.mxu0 0.0
    %161 = vmatprep.subr.mxu0 0.0
    %162 = vmatpush1.xpose.msra.mxu0 0.0
    %163 = vmatprep.subr.mxu0 0.0
    %164 = vmatpush1.xpose.msra.mxu0 0.0
    %165 = vmatprep.subr.mxu0 0.0
    %166 = vmatpush1.xpose.msra.mxu0 0.0
    %167 = vmatprep.subr.mxu0 0.0
    %168 = vmatpush1.xpose.msra.mxu0 0.0
    %169 = vmatprep.subr.mxu0 0.0
    %170 = vmatpush1.xpose.msra.mxu0 0.0
    %171 = vmatprep.subr.mxu0 0.0
    %172 = vmatpush1.xpose.msra.mxu0 0.0
    %173 = vmatprep.subr.mxu0 0.0
    %174 = vmatpush1.xpose.msra.mxu0 0.0
    %175 = vmatprep.subr.mxu0 0.0
    %176 = vmatpush1.xpose.msra.mxu0 0.0
    %177 = vmatprep.subr.mxu0 0.0
    %178 = vmatpush1.xpose.msra.mxu0 0.0
    %179 = vmatprep.subr.mxu0 0.0
    %180 = vmatpush1.xpose.msra.mxu0 0.0
    %181 = vmatprep.subr.mxu0 0.0
    %182 = vmatpush1.xpose.msra.mxu0 0.0
    %183 = vmatprep.subr.mxu0 0.0
    %184 = vmatpush1.xpose.msra.mxu0 0.0
    %185 = vmatprep.subr.mxu0 0.0
    %186 = vmatpush1.xpose.msra.mxu0 0.0
    %187 = vmatprep.subr.mxu0 0.0
    %188 = vmatpush1.xpose.msra.mxu0 0.0
    %189 = vmatprep.subr.mxu0 0.0
    %190 = vmatpush1.xpose.msra.mxu0 0.0
    %191 = vmatprep.subr.mxu0 0.0
    %192 = vmatpush1.xpose.msra.mxu0 0.0
    %193 = vmatprep.subr.mxu0 0.0
    %194 = vmatpush1.xpose.msra.mxu0 0.0
    %195 = vmatprep.subr.mxu0 0.0
    %196 = vmatpush1.xpose.msra.mxu0 0.0
    %197 = vmatprep.subr.mxu0 0.0
    %198 = vmatpush1.xpose.msra.mxu0 0.0
    %199 = vmatprep.subr.mxu0 0.0
    %200 = vmatpush1.xpose.msra.mxu0 0.0
    %201 = vmatprep.subr.mxu0 0.0
    %202 = vmatpush1.xpose.msra.mxu0 0.0
    %203 = vmatprep.subr.mxu0 0.0
    %204 = vmatpush1.xpose.msra.mxu0 0.0
    %205 = vmatprep.subr.mxu0 0.0
    %206 = vmatpush1.xpose.msra.mxu0 0.0
    %207 = vmatprep.mubr.f32.mxu0 0.0
    %208 = vmatmul.mubr.f32.gmra.mrb[0].mxu0 %v135
    %v209 = vpop.f32.mrb[0].mxu0
    %v210 = vadd.f32 0.0, %v209
    %v211 = vpop.f32.mrb[0].mxu0
    %212 = vdwg.mxu0
    %vm213 = vcmp.ge.f32.partialorder %v210, 0.0
    %v214 = vmul.f32 %v210, 0.01
    %v215 = vsel %vm213, %v210, %v214
    %v216 = vld [vmem:[%s2] sm:$0x1]
    %v218 = vsel %vm49, %v216, 0
    %v221 = vsel %vm49, %v215, 0
    %223 = vmatprep.subr.mxu0 0.0
    %224 = vmatpush1.xpose.msra.mxu0 %v221
    %225 = vmatprep.subr.mxu0 0.0
    %226 = vmatpush1.xpose.msra.mxu0 0.0
    %227 = vmatprep.subr.mxu0 0.0
    %228 = vmatpush1.xpose.msra.mxu0 0.0
    %229 = vmatprep.subr.mxu0 0.0
    %230 = vmatpush1.xpose.msra.mxu0 0.0
    %231 = vmatprep.subr.mxu0 0.0
    %232 = vmatpush1.xpose.msra.mxu0 0.0
    %233 = vmatprep.subr.mxu0 0.0
    %234 = vmatpush1.xpose.msra.mxu0 0.0
    %235 = vmatprep.subr.mxu0 0.0
    %236 = vmatpush1.xpose.msra.mxu0 0.0
    %237 = vmatprep.subr.mxu0 0.0
    %238 = vmatpush1.xpose.msra.mxu0 0.0
    %239 = vmatprep.subr.mxu0 0.0
    %240 = vmatpush1.xpose.msra.mxu0 0.0
    %241 = vmatprep.subr.mxu0 0.0
    %242 = vmatpush1.xpose.msra.mxu0 0.0
    %243 = vmatprep.subr.mxu0 0.0
    %244 = vmatpush1.xpose.msra.mxu0 0.0
    %245 = vmatprep.subr.mxu0 0.0
    %246 = vmatpush1.xpose.msra.mxu0 0.0
    %247 = vmatprep.subr.mxu0 0.0
    %248 = vmatpush1.xpose.msra.mxu0 0.0
    %249 = vmatprep.subr.mxu0 0.0
    %250 = vmatpush1.xpose.msra.mxu0 0.0
    %251 = vmatprep.subr.mxu0 0.0
    %252 = vmatpush1.xpose.msra.mxu0 0.0
    %253 = vmatprep.subr.mxu0 0.0
    %254 = vmatpush1.xpose.msra.mxu0 0.0
    %255 = vmatprep.subr.mxu0 0.0
    %256 = vmatpush1.xpose.msra.mxu0 0.0
    %257 = vmatprep.subr.mxu0 0.0
    %258 = vmatpush1.xpose.msra.mxu0 0.0
    %259 = vmatprep.subr.mxu0 0.0
    %260 = vmatpush1.xpose.msra.mxu0 0.0
    %261 = vmatprep.subr.mxu0 0.0
    %262 = vmatpush1.xpose.msra.mxu0 0.0
    %263 = vmatprep.subr.mxu0 0.0
    %264 = vmatpush1.xpose.msra.mxu0 0.0
    %265 = vmatprep.subr.mxu0 0.0
    %266 = vmatpush1.xpose.msra.mxu0 0.0
    %267 = vmatprep.subr.mxu0 0.0
    %268 = vmatpush1.xpose.msra.mxu0 0.0
    %269 = vmatprep.subr.mxu0 0.0
    %270 = vmatpush1.xpose.msra.mxu0 0.0
    %271 = vmatprep.subr.mxu0 0.0
    %272 = vmatpush1.xpose.msra.mxu0 0.0
    %273 = vmatprep.subr.mxu0 0.0
    %274 = vmatpush1.xpose.msra.mxu0 0.0
    %275 = vmatprep.subr.mxu0 0.0
    %276 = vmatpush1.xpose.msra.mxu0 0.0
    %277 = vmatprep.subr.mxu0 0.0
    %278 = vmatpush1.xpose.msra.mxu0 0.0
    %279 = vmatprep.subr.mxu0 0.0
    %280 = vmatpush1.xpose.msra.mxu0 0.0
    %281 = vmatprep.subr.mxu0 0.0
    %282 = vmatpush1.xpose.msra.mxu0 0.0
    %283 = vmatprep.subr.mxu0 0.0
    %284 = vmatpush1.xpose.msra.mxu0 0.0
    %285 = vmatprep.subr.mxu0 0.0
    %286 = vmatpush1.xpose.msra.mxu0 0.0
    %287 = vmatprep.mubr.f32.mxu0 0.0
    %288 = vmatmul.mubr.f32.gmra.mrb[0].mxu0 %v218
    %v289 = vpop.f32.mrb[0].mxu0
    %v290 = vadd.f32 0.0, %v289
    %v291 = vpop.f32.mrb[0].mxu0
    %292 = vdwg.mxu0
    %vm293 = vcmask 57344
    %294 = vst.msk [vmem:[#allocation7] sm:$0x1] %vm293, %v290
    // Predicated region
    $region26: #{tpu_custom_call.1} parent=1 // pred_check
      _
    $region27: #{tpu_custom_call.1} parent=1 // pred_check_branch
      %296 = sbr.rel (0) target = $region29
    $region28: #{tpu_custom_call.1} parent=1 // pred_region
      %s298 = ssub.s32 16, 16
      %299 = vsyncadd [#allocation4], %s298
      %s301 = sshll.u32 [#allocation7], 4
      %s302 = int_to_ptr.vmem [resolvable:$true] %s301
      %304 = dma.vmem_to_hbm [thread:$0]  %s302, 16, %s4, [#allocation4]
    $region29: #{tpu_custom_call.1} parent=1 // pred_fallthru
      _
    // Predicated region
    $region30: #{tpu_custom_call.1} parent=1 // pred_check
      _
    $region31: #{tpu_custom_call.1} parent=1 // pred_check_branch
      %306 = sbr.rel (0) target = $region33
    $region32: #{tpu_custom_call.1} parent=1 // pred_region
      %307 = dma.done [#allocation4], 16
    $region33: #{tpu_custom_call.1} parent=1 // pred_fallthru
      _
    %308 = vsyncpa [#allocation3], 1
    %309 = vsyncpa [#allocation6], 1
    %310 = vsyncpa [#allocation4], 1

</llo_original>
